<compile_context>
chip_gen: v7x
topology: tpu7x:2x2x1
jax: 0.10.0
libtpu: 0.0.40
codegen_flags: <defaults>
</compile_context>

<pallas_src>
import functools

import jax
import jax.numpy as jnp
from jax.experimental import pallas as pl
from jax.experimental.pallas import tpu as pltpu


def _round_up(x, m):
    return (x + m - 1) // m * m


def _codebook_kernel(x_ref, wt_ref, w_ref, q_ref, idx_ref, cnt_ref,
                     *, n_valid, tn, use_bf16_matmul):
    i = pl.program_id(0)

    x = x_ref[...].astype(jnp.float32)                        # (TN, C)

    # l2norm of the x rows only (F.normalize, p=2, dim=-1, eps=1e-12);
    # the codebook arrives pre-normalized (hoisted out of the grid loop).
    x_norm = x / jnp.maximum(
        jnp.sqrt(jnp.sum(x * x, axis=-1, keepdims=True)), 1e-12)

    wt = wt_ref[...]                                          # (C, E), pre-normalized, f32
    if use_bf16_matmul:
        dist = jnp.dot(x_norm.astype(jnp.bfloat16), wt.astype(jnp.bfloat16),
                       preferred_element_type=jnp.float32)    # (TN, E)
    else:
        dist = jnp.dot(x_norm, wt, preferred_element_type=jnp.float32)

    # argmax over the codebook axis (first occurrence on ties, like torch.argmax)
    e_dim = dist.shape[-1]
    max_val = jnp.max(dist, axis=-1, keepdims=True)           # (TN, 1)
    lane_iota = jax.lax.broadcasted_iota(jnp.int32, dist.shape, 1)        # (TN, E)
    idx = jnp.min(jnp.where(dist == max_val, lane_iota, e_dim), axis=-1)  # (TN,)
    idx_ref[...] = idx[None, None, :].astype(jnp.int32)       # (1, 1, TN) lane-dense

    # one-hot @ normalized weight == gather of the selected code rows
    onehot = (lane_iota == idx[:, None]).astype(jnp.float32)  # (TN, E)
    q_ref[...] = jnp.dot(onehot, w_ref[...],
                         preferred_element_type=jnp.float32).astype(q_ref.dtype)

    # per-step code counts (bincount); padded rows masked out so they don't
    # pollute usage statistics.  Summed over the grid axis in the wrapper so
    # the grid stays "parallel" (no cross-step accumulator).
    row_iota = jax.lax.broadcasted_iota(jnp.int32, (tn, 1), 0)            # (TN, 1)
    valid = (i * tn + row_iota) < n_valid                                  # (TN, 1)
    cnt = jnp.sum(jnp.where(valid, onehot, 0.0), axis=0, keepdims=True)    # (1, E)
    cnt_ref[...] = cnt[None, :, :].astype(jnp.int32)          # (1, 1, E)


class CosinesimCodebookPallas:
    """JAX/Pallas re-implementation of CosinesimCodebook's forward pass."""

    def __init__(self, embedding_dim, num_embeddings, seed=0, use_bf16_matmul=False):
        self.embedding_dim = embedding_dim
        self.num_embeddings = num_embeddings
        self.use_bf16_matmul = use_bf16_matmul
        # nn.Embedding weight init: uniform(-1/num_embeddings, 1/num_embeddings)
        key = jax.random.PRNGKey(seed)
        lim = 1.0 / num_embeddings
        self.weight = jax.random.uniform(
            key, (num_embeddings, embedding_dim),
            minval=-lim, maxval=lim, dtype=jnp.float32)

    def __call__(self, x):
        # x: (B, HW, C); DMA'd in its original dtype, cast to f32 in-kernel.
        b, hw, c = x.shape
        e = self.num_embeddings
        assert c == self.embedding_dim
        n = b * hw

        # --- codebook prep hoisted out of the grid loop (plain XLA, once) ---
        w = self.weight.astype(jnp.float32)
        w_norm = w / jnp.maximum(
            jnp.sqrt(jnp.sum(w * w, axis=-1, keepdims=True)), 1e-12)       # (E, C)
        # mirrors embedding.weight.data.copy_(l2norm(...)) in the reference
        self.weight = w_norm
        w_norm_t = w_norm.T                                                 # (C, E)

        # --- tiling: big row tiles, pad N up to a tile multiple ---
        tn = min(512, _round_up(n, 8))
        n_pad = _round_up(n, tn)
        grid = n_pad // tn

        flat_x = x.reshape(n, c)
        if n_pad != n:
            flat_x = jnp.pad(flat_x, ((0, n_pad - n), (0, 0)))

        kernel = functools.partial(
            _codebook_kernel, n_valid=n, tn=tn,
            use_bf16_matmul=self.use_bf16_matmul)

        # VMEM budget (double-buffered tiles + resident codebook + intermediates)
        itemsize = jnp.dtype(flat_x.dtype).itemsize
        vmem_bytes = (
            2 * tn * c * itemsize      # x tiles
            + 2 * tn * c * 4           # quantized tiles
            + 2 * e * c * 4            # w_norm + w_norm_T (block index constant)
            + 2 * tn * e * 4           # dist + onehot intermediates
            + 2 * (tn + e) * 4         # idx + counts tiles
        )
        vmem_limit = int(min(max(2 * vmem_bytes, 32 << 20), 64 << 20))

        quantized_pad, idx_tiles, cnt_tiles = pl.pallas_call(
            kernel,
            out_shape=(
                jax.ShapeDtypeStruct((n_pad, c), jnp.float32),
                jax.ShapeDtypeStruct((grid, 1, tn), jnp.int32),
                jax.ShapeDtypeStruct((grid, 1, e), jnp.int32),
            ),
            grid_spec=pltpu.PrefetchScalarGridSpec(
                num_scalar_prefetch=0,
                grid=(grid,),
                in_specs=[
                    pl.BlockSpec((tn, c), lambda i: (i, 0)),     # x tile
                    pl.BlockSpec((c, e), lambda i: (0, 0)),      # w_norm^T (C, E)
                    pl.BlockSpec((e, c), lambda i: (0, 0)),      # w_norm   (E, C)
                ],
                out_specs=[
                    pl.BlockSpec((tn, c), lambda i: (i, 0)),     # quantized tile
                    pl.BlockSpec((1, 1, tn), lambda i: (i, 0, 0)),  # idx (lane-dense)
                    pl.BlockSpec((1, 1, e), lambda i: (i, 0, 0)),   # per-step counts
                ],
            ),
            compiler_params=pltpu.CompilerParams(
                dimension_semantics=("parallel",),
                vmem_limit_bytes=vmem_limit),
        )(flat_x, w_norm_t, w_norm)

        quantized = quantized_pad[:n].reshape(b, hw, c)
        embed_idx = idx_tiles.reshape(-1)[:n].reshape(b, hw)    # int32 (torch: int64)
        codebook_cnt = cnt_tiles.reshape(grid, e).sum(axis=0)

        zero_cnt = jnp.sum((codebook_cnt == 0).astype(jnp.int32))
        code_usage = 100.0 * zero_cnt.astype(jnp.float32) / e
        return quantized, embed_idx, code_usage


def _reference_forward(x, weight):
    """Pure-JAX reference of the PyTorch forward (for a sanity check)."""
    x = x.astype(jnp.float32)
    b, hw, c = x.shape
    e = weight.shape[0]
    xn = x / jnp.maximum(jnp.linalg.norm(x, axis=-1, keepdims=True), 1e-12)
    wn = weight / jnp.maximum(jnp.linalg.norm(weight, axis=-1, keepdims=True), 1e-12)
    flat = xn.reshape(b * hw, c)
    dist = (flat @ wn.T).reshape(b, hw, e)
    idx = jnp.argmax(dist, axis=-1)
    onehot = jax.nn.one_hot(idx, e, dtype=jnp.float32)
    quant = onehot @ wn
    cnt = jnp.sum(onehot.reshape(-1, e), axis=0)
    usage = 100.0 * jnp.sum(cnt == 0) / e
    return quant, idx, usage, dist


def _check(module, x, atol=1e-5, tie_tol=1e-4):
    q, idx, usage = module(x)
    jax.block_until_ready((q, idx, usage))

    q_ref, idx_ref, usage_ref, dist_ref = _reference_forward(x, module.weight)

    e = module.num_embeddings
    assert q.shape == x.shape
    assert idx.shape == x.shape[:2]

    # Argmax may legitimately differ from the XLA reference only on near-ties
    # (different f32 accumulation orders); require exact parity elsewhere.
    top2 = jax.lax.top_k(dist_ref, 2)[0]
    solid = (top2[..., 0] - top2[..., 1]) > tie_tol
    n_soft = int(jnp.sum(~solid))

    assert bool(jnp.all(jnp.where(solid, idx == idx_ref.astype(jnp.int32), True)))
    assert bool(jnp.all(jnp.where(solid[..., None],
                                  jnp.abs(q - q_ref) < atol, True)))
    assert abs(float(usage) - float(usage_ref)) <= 100.0 * n_soft / e + 1e-4


if __name__ == "__main__":
    C = 32            # embedding_dim
    E = 128           # num_embeddings

    module = CosinesimCodebookPallas(embedding_dim=C, num_embeddings=E, seed=0)

    # Small primary shape: x : (B, HxW, C)
    key = jax.random.PRNGKey(0)
    x = jax.random.normal(key, (2, 64, C), dtype=jnp.float32)
    _check(module, x)

    # Larger shape exercising grid > 1 plus row padding / count masking.
    key2 = jax.random.PRNGKey(1)
    x2 = jax.random.normal(key2, (2, 600, C), dtype=jnp.float32)
    _check(module, x2)

    print("KERNEL_OK")
</pallas_src>

<mosaic_0001>
module attributes {stable_mosaic.version = 11 : i64} {
  func.func @_codebook_kernel(%arg0: i32, %arg1: memref<128x32xf32, #tpu.memory_space<vmem>>, %arg2: memref<32x128xf32, #tpu.memory_space<vmem>>, %arg3: memref<128x32xf32, #tpu.memory_space<vmem>>, %arg4: memref<128x32xf32, #tpu.memory_space<vmem>>, %arg5: memref<1x1x128xi32, #tpu.memory_space<vmem>>, %arg6: memref<1x1x128xi32, #tpu.memory_space<vmem>>) attributes {dimension_semantics = [#tpu.dimension_semantics<parallel>], iteration_bounds = array<i64: 1>, scalar_prefetch = 0 : i64, scratch_operands = 0 : i64, tpu.core_type = #tpu.core_type<tc>, window_params = [{transform_indices = @transform_0, window_bounds = array<i64: 128, 32>}, {pipeline_mode = #tpu.pipeline_mode<synchronous>, transform_indices = @transform_1, window_bounds = array<i64: 32, 128>}, {pipeline_mode = #tpu.pipeline_mode<synchronous>, transform_indices = @transform_2, window_bounds = array<i64: 128, 32>}, {transform_indices = @transform_3, window_bounds = array<i64: 128, 32>}, {transform_indices = @transform_4, window_bounds = array<i64: 1, 1, 128>}, {transform_indices = @transform_5, window_bounds = array<i64: 1, 1, 128>}]} {
    %c0 = arith.constant 0 : index
    %c0_0 = arith.constant 0 : index
    %0 = vector.load %arg1[%c0, %c0_0] : memref<128x32xf32, #tpu.memory_space<vmem>>, vector<128x32xf32>
    %1 = arith.mulf %0, %0 : vector<128x32xf32>
    %cst = arith.constant dense<0.000000e+00> : vector<128xf32>
    %2 = vector.multi_reduction <add>, %1, %cst [1] : vector<128x32xf32> to vector<128xf32>
    %3 = vector.shape_cast %2 : vector<128xf32> to vector<128x1xf32>
    %4 = math.sqrt %3 : vector<128x1xf32>
    %cst_1 = arith.constant 9.99999996E-13 : f32
    %5 = vector.broadcast %cst_1 : f32 to vector<128x1xf32>
    %6 = arith.maximumf %4, %5 : vector<128x1xf32>
    %7 = vector.broadcast %6 : vector<128x1xf32> to vector<128x32xf32>
    %8 = arith.divf %0, %7 : vector<128x32xf32>
    %c0_2 = arith.constant 0 : index
    %c0_3 = arith.constant 0 : index
    %9 = vector.load %arg2[%c0_2, %c0_3] : memref<32x128xf32, #tpu.memory_space<vmem>>, vector<32x128xf32>
    %cst_4 = arith.constant dense<0.000000e+00> : vector<128x128xf32>
    %10 = tpu.matmul %8, %9, %cst_4 {dimension_numbers = #tpu.dot_dimension_numbers<[1], [0], [0], [1], [0, 0, 1, 1], [], []>} : vector<128x32xf32>, vector<32x128xf32>, vector<128x128xf32> -> vector<128x128xf32>
    %cst_5 = arith.constant dense<0xFF800000> : vector<128xf32>
    %11 = vector.multi_reduction <maximumf>, %10, %cst_5 [1] : vector<128x128xf32> to vector<128xf32>
    %12 = vector.shape_cast %11 : vector<128xf32> to vector<128x1xf32>
    %13 = tpu.iota {dimensions = array<i32: 1>} : vector<128x128xi32>
    %14 = vector.broadcast %12 : vector<128x1xf32> to vector<128x128xf32>
    %15 = arith.cmpf oeq, %10, %14 : vector<128x128xf32>
    %c128_i32 = arith.constant 128 : i32
    %16 = vector.broadcast %c128_i32 : i32 to vector<128x128xi32>
    %17 = arith.select %15, %13, %16 : vector<128x128xi1>, vector<128x128xi32>
    %cst_6 = arith.constant dense<2147483647> : vector<128xi32>
    %18 = vector.multi_reduction <minsi>, %17, %cst_6 [1] : vector<128x128xi32> to vector<128xi32>
    %19 = vector.shape_cast %18 : vector<128xi32> to vector<1x1x128xi32>
    %c0_7 = arith.constant 0 : index
    %c0_8 = arith.constant 0 : index
    %c0_9 = arith.constant 0 : index
    %20 = vector.load %arg5[%c0_7, %c0_8, %c0_9] : memref<1x1x128xi32, #tpu.memory_space<vmem>>, vector<1x1x128xi32>
    tpu.vector_store %arg5[%c0_7, %c0_8, %c0_9], %19 {strides = array<i32>} : memref<1x1x128xi32, #tpu.memory_space<vmem>>, vector<1x1x128xi32>,
    %21 = vector.shape_cast %18 : vector<128xi32> to vector<128x1xi32>
    %22 = vector.broadcast %21 : vector<128x1xi32> to vector<128x128xi32>
    %23 = arith.cmpi eq, %13, %22 : vector<128x128xi32>
    %24 = arith.extui %23 : vector<128x128xi1> to vector<128x128xi32>
    %25 = arith.sitofp %24 : vector<128x128xi32> to vector<128x128xf32>
    %c0_10 = arith.constant 0 : index
    %c0_11 = arith.constant 0 : index
    %26 = vector.load %arg3[%c0_10, %c0_11] : memref<128x32xf32, #tpu.memory_space<vmem>>, vector<128x32xf32>
    %cst_12 = arith.constant dense<0.000000e+00> : vector<128x32xf32>
    %27 = tpu.matmul %25, %26, %cst_12 {dimension_numbers = #tpu.dot_dimension_numbers<[1], [0], [0], [1], [0, 0, 1, 1], [], []>} : vector<128x128xf32>, vector<128x32xf32>, vector<128x32xf32> -> vector<128x32xf32>
    %c0_13 = arith.constant 0 : index
    %c0_14 = arith.constant 0 : index
    %28 = vector.load %arg4[%c0_13, %c0_14] : memref<128x32xf32, #tpu.memory_space<vmem>>, vector<128x32xf32>
    tpu.vector_store %arg4[%c0_13, %c0_14], %27 {strides = array<i32>} : memref<128x32xf32, #tpu.memory_space<vmem>>, vector<128x32xf32>,
    %29 = tpu.iota {dimensions = array<i32: 0>} : vector<128x1xi32>
    %c128_i32_15 = arith.constant 128 : i32
    %30 = arith.muli %arg0, %c128_i32_15 : i32
    %31 = vector.broadcast %30 : i32 to vector<128x1xi32>
    %32 = arith.addi %31, %29 : vector<128x1xi32>
    %c128_i32_16 = arith.constant 128 : i32
    %33 = vector.broadcast %c128_i32_16 : i32 to vector<128x1xi32>
    %34 = arith.cmpi slt, %32, %33 : vector<128x1xi32>
    %cst_17 = arith.constant 0.000000e+00 : f32
    %35 = vector.shape_cast %34 : vector<128x1xi1> to vector<128x1xi1>
    %36 = vector.broadcast %35 : vector<128x1xi1> to vector<128x128xi1>
    %37 = vector.broadcast %cst_17 : f32 to vector<128x128xf32>
    %38 = arith.select %36, %25, %37 : vector<128x128xi1>, vector<128x128xf32>
    %cst_18 = arith.constant dense<0.000000e+00> : vector<128xf32>
    %39 = vector.multi_reduction <add>, %38, %cst_18 [0] : vector<128x128xf32> to vector<128xf32>
    %40 = vector.shape_cast %39 : vector<128xf32> to vector<1x128xf32>
    %41 = vector.shape_cast %40 : vector<1x128xf32> to vector<1x1x128xf32>
    %42 = arith.fptosi %41 : vector<1x1x128xf32> to vector<1x1x128xi32>
    %c0_19 = arith.constant 0 : index
    %c0_20 = arith.constant 0 : index
    %c0_21 = arith.constant 0 : index
    %43 = vector.load %arg6[%c0_19, %c0_20, %c0_21] : memref<1x1x128xi32, #tpu.memory_space<vmem>>, vector<1x1x128xi32>
    tpu.vector_store %arg6[%c0_19, %c0_20, %c0_21], %42 {strides = array<i32>} : memref<1x1x128xi32, #tpu.memory_space<vmem>>, vector<1x1x128xi32>,
    return
  }
  func.func @transform_0(%arg0: i32) -> (i32, i32) {
    %c0_i32 = arith.constant 0 : i32
    %c0_i32_0 = arith.constant 0 : i32
    return %arg0, %c0_i32 : i32, i32
  }
  func.func @transform_1(%arg0: i32) -> (i32, i32) {
    %c0_i32 = arith.constant 0 : i32
    %c0_i32_0 = arith.constant 0 : i32
    %c0_i32_1 = arith.constant 0 : i32
    return %c0_i32, %c0_i32_0 : i32, i32
  }
  func.func @transform_2(%arg0: i32) -> (i32, i32) {
    %c0_i32 = arith.constant 0 : i32
    %c0_i32_0 = arith.constant 0 : i32
    %c0_i32_1 = arith.constant 0 : i32
    return %c0_i32, %c0_i32_0 : i32, i32
  }
  func.func @transform_3(%arg0: i32) -> (i32, i32) {
    %c0_i32 = arith.constant 0 : i32
    %c0_i32_0 = arith.constant 0 : i32
    return %arg0, %c0_i32 : i32, i32
  }
  func.func @transform_4(%arg0: i32) -> (i32, i32, i32) {
    %c0_i32 = arith.constant 0 : i32
    %c0_i32_0 = arith.constant 0 : i32
    %c0_i32_1 = arith.constant 0 : i32
    return %arg0, %c0_i32, %c0_i32_0 : i32, i32, i32
  }
  func.func @transform_5(%arg0: i32) -> (i32, i32, i32) {
    %c0_i32 = arith.constant 0 : i32
    %c0_i32_0 = arith.constant 0 : i32
    %c0_i32_1 = arith.constant 0 : i32
    return %arg0, %c0_i32, %c0_i32_0 : i32, i32, i32
  }
}

</mosaic_0001>

<llo_original>
// kernel: tpu_custom_call.1
$region0: #{tpu_custom_call.1}
  #allocation0 [shape = 'u32[]', space=smem, size = 0x4, offset = 0x4, fixed_abs, tag = 'smem constant byte address 0x4 - core index']
  #allocation1 [shape = 'u32[144,128]{1,0:T(1,128)}', space=vmem, size = 0x12000, scoped, tag = 'internal scratch']
  %s0 = inlined_call_operand.vmem [shape: f32[128,32], index: 0, kind: input, shape index: {}]
  %s1 = inlined_call_operand.vmem [shape: f32[32,128], index: 1, kind: input, shape index: {}]
  %s2 = inlined_call_operand.vmem [shape: f32[128,32], index: 2, kind: input, shape index: {}]
  %s3 = inlined_call_operand.vmem [shape: f32[128,32], index: 3, kind: output, shape index: {0}]
  %s4 = inlined_call_operand.hbm [shape: s32[1,1,128], index: 4, kind: output, shape index: {1}]
  %s5 = inlined_call_operand.hbm [shape: s32[1,1,128], index: 5, kind: output, shape index: {2}]
  %6 = xla_tuple %s3, %s4, %s5
  %s7 = sld [smem:[#allocation0]]
  $region38: #{tpu_custom_call.1} parent=0
    _
  %s9 = ssub.s32 1, %s7
  %s10 = scalar_select 0, %s9, %s7
  $region1: #{tpu_custom_call.1} parent=0
    #allocation2 [shape = 'u8[512]{0}', space=vmem, size = 0x400, scoped, tag = 'output window, operand 1, single buffered']
    #allocation3 [shape = 's32[1]{0}', space=sflag, size = 0x4, scoped, tag = 'scoped memory for tpu_custom_call.1']
    #allocation4 [shape = 'u8[512]{0}', space=vmem, size = 0x400, scoped, tag = 'output window, operand 2, single buffered']
    #allocation5 [shape = 's32[1]{0}', space=sflag, size = 0x4, scoped, tag = 'scoped memory for tpu_custom_call.1']
    %11 = vsyncpa [#allocation3], 0
    %12 = vsyncpa [#allocation5], 0
    // Predicated region
    $region2: #{tpu_custom_call.1} parent=1 // pred_check
      _
    $region3: #{tpu_custom_call.1} parent=1 // pred_check_branch
      %14 = sbr.rel (0) target = $region5
    $region4: #{tpu_custom_call.1} parent=1 // pred_region
      _
    $region5: #{tpu_custom_call.1} parent=1 // pred_fallthru
      _
    // Predicated region
    $region6: #{tpu_custom_call.1} parent=1 // pred_check
      _
    $region7: #{tpu_custom_call.1} parent=1 // pred_check_branch
      %16 = sbr.rel (0) target = $region9
    $region8: #{tpu_custom_call.1} parent=1 // pred_region
      _
    $region9: #{tpu_custom_call.1} parent=1 // pred_fallthru
      _
    // Predicated region
    $region10: #{tpu_custom_call.1} parent=1 // pred_check
      _
    $region11: #{tpu_custom_call.1} parent=1 // pred_check_branch
      %18 = sbr.rel (0) target = $region13
    $region12: #{tpu_custom_call.1} parent=1 // pred_region
      _
    $region13: #{tpu_custom_call.1} parent=1 // pred_fallthru
      _
    %v19 = vld [vmem:[%s0] sm:$0xff]
    %v20 = vld [vmem:[%s0 + $0x8] sm:$0xff]
    %v21 = vld [vmem:[%s0 + $0x10] sm:$0xff]
    %v22 = vld [vmem:[%s0 + $0x18] sm:$0xff]
    %v23 = vld [vmem:[%s0 + $0x20] sm:$0xff]
    %v24 = vld [vmem:[%s0 + $0x28] sm:$0xff]
    %v25 = vld [vmem:[%s0 + $0x30] sm:$0xff]
    %v26 = vld [vmem:[%s0 + $0x38] sm:$0xff]
    %v27 = vld [vmem:[%s0 + $0x40] sm:$0xff]
    %v28 = vld [vmem:[%s0 + $0x48] sm:$0xff]
    %v29 = vld [vmem:[%s0 + $0x50] sm:$0xff]
    %v30 = vld [vmem:[%s0 + $0x58] sm:$0xff]
    %v31 = vld [vmem:[%s0 + $0x60] sm:$0xff]
    %v32 = vld [vmem:[%s0 + $0x68] sm:$0xff]
    %v33 = vld [vmem:[%s0 + $0x70] sm:$0xff]
    %v34 = vld [vmem:[%s0 + $0x78] sm:$0xff]
    %v35 = vmul.f32 %v19, %v19
    %v36 = vmul.f32 %v20, %v20
    %v37 = vmul.f32 %v21, %v21
    %v38 = vmul.f32 %v22, %v22
    %v39 = vmul.f32 %v23, %v23
    %v40 = vmul.f32 %v24, %v24
    %v41 = vmul.f32 %v25, %v25
    %v42 = vmul.f32 %v26, %v26
    %v43 = vmul.f32 %v27, %v27
    %v44 = vmul.f32 %v28, %v28
    %v45 = vmul.f32 %v29, %v29
    %v46 = vmul.f32 %v30, %v30
    %v47 = vmul.f32 %v31, %v31
    %v48 = vmul.f32 %v32, %v32
    %v49 = vmul.f32 %v33, %v33
    %v50 = vmul.f32 %v34, %v34
    %vm51 = vcmask 261120
    %v52 = vsel %vm51, %v35, 0.0
    %53 = vadd.xlane.f32.xlu0 %v52
    %v54 = vpop.xlane.xlu0 %53
    %v55 = vsel %vm51, %v36, 0.0
    %56 = vadd.xlane.f32.xlu0 %v55
    %v57 = vpop.xlane.xlu0 %56
    %v58 = vsel %vm51, %v37, 0.0
    %59 = vadd.xlane.f32.xlu0 %v58
    %v60 = vpop.xlane.xlu0 %59
    %v61 = vsel %vm51, %v38, 0.0
    %62 = vadd.xlane.f32.xlu0 %v61
    %v63 = vpop.xlane.xlu0 %62
    %v64 = vsel %vm51, %v39, 0.0
    %65 = vadd.xlane.f32.xlu0 %v64
    %v66 = vpop.xlane.xlu0 %65
    %v67 = vsel %vm51, %v40, 0.0
    %68 = vadd.xlane.f32.xlu0 %v67
    %v69 = vpop.xlane.xlu0 %68
    %v70 = vsel %vm51, %v41, 0.0
    %71 = vadd.xlane.f32.xlu0 %v70
    %v72 = vpop.xlane.xlu0 %71
    %v73 = vsel %vm51, %v42, 0.0
    %74 = vadd.xlane.f32.xlu0 %v73
    %v75 = vpop.xlane.xlu0 %74
    %v76 = vsel %vm51, %v43, 0.0
    %77 = vadd.xlane.f32.xlu0 %v76
    %v78 = vpop.xlane.xlu0 %77
    %v79 = vsel %vm51, %v44, 0.0
    %80 = vadd.xlane.f32.xlu0 %v79
    %v81 = vpop.xlane.xlu0 %80
    %v82 = vsel %vm51, %v45, 0.0
    %83 = vadd.xlane.f32.xlu0 %v82
    %v84 = vpop.xlane.xlu0 %83
    %v85 = vsel %vm51, %v46, 0.0
    %86 = vadd.xlane.f32.xlu0 %v85
    %v87 = vpop.xlane.xlu0 %86
    %v88 = vsel %vm51, %v47, 0.0
    %89 = vadd.xlane.f32.xlu0 %v88
    %v90 = vpop.xlane.xlu0 %89
    %v91 = vsel %vm51, %v48, 0.0
    %92 = vadd.xlane.f32.xlu0 %v91
    %v93 = vpop.xlane.xlu0 %92
    %v94 = vsel %vm51, %v49, 0.0
    %95 = vadd.xlane.f32.xlu0 %v94
    %v96 = vpop.xlane.xlu0 %95
    %v97 = vsel %vm51, %v50, 0.0
    %98 = vadd.xlane.f32.xlu0 %v97
    %v99 = vpop.xlane.xlu0 %98
    %v100 = vrsqrt.pop %v54
    %v101 = vmul.f32 %v54, %v100
    %vm102 = vcmp.eq.f32.partialorder %v54, inf
    %v103 = vsel %vm102, %v54, %v101
    %vm104 = vcmp.eq.f32.partialorder %v54, 0.0
    %v105 = vand.u32 %v54, 2147483648
    %v106 = vsel %vm104, %v105, %v103
    %v107 = vrsqrt.pop %v57
    %v108 = vmul.f32 %v57, %v107
    %vm109 = vcmp.eq.f32.partialorder %v57, inf
    %v110 = vsel %vm109, %v57, %v108
    %vm111 = vcmp.eq.f32.partialorder %v57, 0.0
    %v112 = vand.u32 %v57, 2147483648
    %v113 = vsel %vm111, %v112, %v110
    %v114 = vrsqrt.pop %v60
    %v115 = vmul.f32 %v60, %v114
    %vm116 = vcmp.eq.f32.partialorder %v60, inf
    %v117 = vsel %vm116, %v60, %v115
    %vm118 = vcmp.eq.f32.partialorder %v60, 0.0
    %v119 = vand.u32 %v60, 2147483648
    %v120 = vsel %vm118, %v119, %v117
    %v121 = vrsqrt.pop %v63
    %v122 = vmul.f32 %v63, %v121
    %vm123 = vcmp.eq.f32.partialorder %v63, inf
    %v124 = vsel %vm123, %v63, %v122
    %vm125 = vcmp.eq.f32.partialorder %v63, 0.0
    %v126 = vand.u32 %v63, 2147483648
    %v127 = vsel %vm125, %v126, %v124
    %v128 = vrsqrt.pop %v66
    %v129 = vmul.f32 %v66, %v128
    %vm130 = vcmp.eq.f32.partialorder %v66, inf
    %v131 = vsel %vm130, %v66, %v129
    %vm132 = vcmp.eq.f32.partialorder %v66, 0.0
    %v133 = vand.u32 %v66, 2147483648
    %v134 = vsel %vm132, %v133, %v131
    %v135 = vrsqrt.pop %v69
    %v136 = vmul.f32 %v69, %v135
    %vm137 = vcmp.eq.f32.partialorder %v69, inf
    %v138 = vsel %vm137, %v69, %v136
    %vm139 = vcmp.eq.f32.partialorder %v69, 0.0
    %v140 = vand.u32 %v69, 2147483648
    %v141 = vsel %vm139, %v140, %v138
    %v142 = vrsqrt.pop %v72
    %v143 = vmul.f32 %v72, %v142
    %vm144 = vcmp.eq.f32.partialorder %v72, inf
    %v145 = vsel %vm144, %v72, %v143
    %vm146 = vcmp.eq.f32.partialorder %v72, 0.0
    %v147 = vand.u32 %v72, 2147483648
    %v148 = vsel %vm146, %v147, %v145
    %v149 = vrsqrt.pop %v75
    %v150 = vmul.f32 %v75, %v149
    %vm151 = vcmp.eq.f32.partialorder %v75, inf
    %v152 = vsel %vm151, %v75, %v150
    %vm153 = vcmp.eq.f32.partialorder %v75, 0.0
    %v154 = vand.u32 %v75, 2147483648
    %v155 = vsel %vm153, %v154, %v152
    %v156 = vrsqrt.pop %v78
    %v157 = vmul.f32 %v78, %v156
    %vm158 = vcmp.eq.f32.partialorder %v78, inf
    %v159 = vsel %vm158, %v78, %v157
    %vm160 = vcmp.eq.f32.partialorder %v78, 0.0
    %v161 = vand.u32 %v78, 2147483648
    %v162 = vsel %vm160, %v161, %v159
    %v163 = vrsqrt.pop %v81
    %v164 = vmul.f32 %v81, %v163
    %vm165 = vcmp.eq.f32.partialorder %v81, inf
    %v166 = vsel %vm165, %v81, %v164
    %vm167 = vcmp.eq.f32.partialorder %v81, 0.0
    %v168 = vand.u32 %v81, 2147483648
    %v169 = vsel %vm167, %v168, %v166
    %v170 = vrsqrt.pop %v84
    %v171 = vmul.f32 %v84, %v170
    %vm172 = vcmp.eq.f32.partialorder %v84, inf
    %v173 = vsel %vm172, %v84, %v171
    %vm174 = vcmp.eq.f32.partialorder %v84, 0.0
    %v175 = vand.u32 %v84, 2147483648
    %v176 = vsel %vm174, %v175, %v173
    %v177 = vrsqrt.pop %v87
    %v178 = vmul.f32 %v87, %v177
    %vm179 = vcmp.eq.f32.partialorder %v87, inf
    %v180 = vsel %vm179, %v87, %v178
    %vm181 = vcmp.eq.f32.partialorder %v87, 0.0
    %v182 = vand.u32 %v87, 2147483648
    %v183 = vsel %vm181, %v182, %v180
    %v184 = vrsqrt.pop %v90
    %v185 = vmul.f32 %v90, %v184
    %vm186 = vcmp.eq.f32.partialorder %v90, inf
    %v187 = vsel %vm186, %v90, %v185
    %vm188 = vcmp.eq.f32.partialorder %v90, 0.0
    %v189 = vand.u32 %v90, 2147483648
    %v190 = vsel %vm188, %v189, %v187
    %v191 = vrsqrt.pop %v93
    %v192 = vmul.f32 %v93, %v191
    %vm193 = vcmp.eq.f32.partialorder %v93, inf
    %v194 = vsel %vm193, %v93, %v192
    %vm195 = vcmp.eq.f32.partialorder %v93, 0.0
    %v196 = vand.u32 %v93, 2147483648
    %v197 = vsel %vm195, %v196, %v194
    %v198 = vrsqrt.pop %v96
    %v199 = vmul.f32 %v96, %v198
    %vm200 = vcmp.eq.f32.partialorder %v96, inf
    %v201 = vsel %vm200, %v96, %v199
    %vm202 = vcmp.eq.f32.partialorder %v96, 0.0
    %v203 = vand.u32 %v96, 2147483648
    %v204 = vsel %vm202, %v203, %v201
    %v205 = vrsqrt.pop %v99
    %v206 = vmul.f32 %v99, %v205
    %vm207 = vcmp.eq.f32.partialorder %v99, inf
    %v208 = vsel %vm207, %v99, %v206
    %vm209 = vcmp.eq.f32.partialorder %v99, 0.0
    %v210 = vand.u32 %v99, 2147483648
    %v211 = vsel %vm209, %v210, %v208
    %v212 = vmax.f32 %v106, 1e-12
    %v213 = vmax.f32 %v113, 1e-12
    %v214 = vmax.f32 %v120, 1e-12
    %v215 = vmax.f32 %v127, 1e-12
    %v216 = vmax.f32 %v134, 1e-12
    %v217 = vmax.f32 %v141, 1e-12
    %v218 = vmax.f32 %v148, 1e-12
    %v219 = vmax.f32 %v155, 1e-12
    %v220 = vmax.f32 %v162, 1e-12
    %v221 = vmax.f32 %v169, 1e-12
    %v222 = vmax.f32 %v176, 1e-12
    %v223 = vmax.f32 %v183, 1e-12
    %v224 = vmax.f32 %v190, 1e-12
    %v225 = vmax.f32 %v197, 1e-12
    %v226 = vmax.f32 %v204, 1e-12
    %v227 = vmax.f32 %v211, 1e-12
    %v228 = vrcp.pop %v212
    %v229 = vmul.f32 %v19, %v228
    %v230 = vrcp.pop %v213
    %v231 = vmul.f32 %v20, %v230
    %v232 = vrcp.pop %v214
    %v233 = vmul.f32 %v21, %v232
    %v234 = vrcp.pop %v215
    %v235 = vmul.f32 %v22, %v234
    %v236 = vrcp.pop %v216
    %v237 = vmul.f32 %v23, %v236
    %v238 = vrcp.pop %v217
    %v239 = vmul.f32 %v24, %v238
    %v240 = vrcp.pop %v218
    %v241 = vmul.f32 %v25, %v240
    %v242 = vrcp.pop %v219
    %v243 = vmul.f32 %v26, %v242
    %v244 = vrcp.pop %v220
    %v245 = vmul.f32 %v27, %v244
    %v246 = vrcp.pop %v221
    %v247 = vmul.f32 %v28, %v246
    %v248 = vrcp.pop %v222
    %v249 = vmul.f32 %v29, %v248
    %v250 = vrcp.pop %v223
    %v251 = vmul.f32 %v30, %v250
    %v252 = vrcp.pop %v224
    %v253 = vmul.f32 %v31, %v252
    %v254 = vrcp.pop %v225
    %v255 = vmul.f32 %v32, %v254
    %v256 = vrcp.pop %v226
    %v257 = vmul.f32 %v33, %v256
    %v258 = vrcp.pop %v227
    %v259 = vmul.f32 %v34, %v258
    %v260 = vld [vmem:[%s1] sm:$0xff]
    %v261 = vld [vmem:[%s1 + $0x8] sm:$0xff]
    %v262 = vld [vmem:[%s1 + $0x10] sm:$0xff]
    %v263 = vld [vmem:[%s1 + $0x18] sm:$0xff]
    %v265 = vsel %vm51, %v229, 0
    %v268 = vsel %vm51, %v231, 0
    %v271 = vsel %vm51, %v233, 0
    %v274 = vsel %vm51, %v235, 0
    %v277 = vsel %vm51, %v237, 0
    %v280 = vsel %vm51, %v239, 0
    %v283 = vsel %vm51, %v241, 0
    %v286 = vsel %vm51, %v243, 0
    %v289 = vsel %vm51, %v245, 0
    %v292 = vsel %vm51, %v247, 0
    %v295 = vsel %vm51, %v249, 0
    %v298 = vsel %vm51, %v251, 0
    %v301 = vsel %vm51, %v253, 0
    %v304 = vsel %vm51, %v255, 0
    %v307 = vsel %vm51, %v257, 0
    %v310 = vsel %vm51, %v259, 0
    %312 = vmatprep.subr.mxu0 0.0
    %313 = vmatpush1.msra.mxu0 %v260
    %314 = vmatprep.subr.mxu0 0.0
    %315 = vmatpush1.msra.mxu0 %v261
    %316 = vmatprep.subr.mxu0 0.0
    %317 = vmatpush1.msra.mxu0 %v262
    %318 = vmatprep.subr.mxu0 0.0
    %319 = vmatpush1.msra.mxu0 %v263
    %320 = vmatprep.subr.mxu0 0.0
    %321 = vmatpush1.msra.mxu0 0.0
    %322 = vmatprep.subr.mxu0 0.0
    %323 = vmatpush1.msra.mxu0 0.0
    %324 = vmatprep.subr.mxu0 0.0
    %325 = vmatpush1.msra.mxu0 0.0
    %326 = vmatprep.subr.mxu0 0.0
    %327 = vmatpush1.msra.mxu0 0.0
    %328 = vmatprep.subr.mxu0 0.0
    %329 = vmatpush1.msra.mxu0 0.0
    %330 = vmatprep.subr.mxu0 0.0
    %331 = vmatpush1.msra.mxu0 0.0
    %332 = vmatprep.subr.mxu0 0.0
    %333 = vmatpush1.msra.mxu0 0.0
    %334 = vmatprep.subr.mxu0 0.0
    %335 = vmatpush1.msra.mxu0 0.0
    %336 = vmatprep.subr.mxu0 0.0
    %337 = vmatpush1.msra.mxu0 0.0
    %338 = vmatprep.subr.mxu0 0.0
    %339 = vmatpush1.msra.mxu0 0.0
    %340 = vmatprep.subr.mxu0 0.0
    %341 = vmatpush1.msra.mxu0 0.0
    %342 = vmatprep.subr.mxu0 0.0
    %343 = vmatpush1.msra.mxu0 0.0
    %344 = vmatprep.subr.mxu0 0.0
    %345 = vmatpush1.msra.mxu0 0.0
    %346 = vmatprep.subr.mxu0 0.0
    %347 = vmatpush1.msra.mxu0 0.0
    %348 = vmatprep.subr.mxu0 0.0
    %349 = vmatpush1.msra.mxu0 0.0
    %350 = vmatprep.subr.mxu0 0.0
    %351 = vmatpush1.msra.mxu0 0.0
    %352 = vmatprep.subr.mxu0 0.0
    %353 = vmatpush1.msra.mxu0 0.0
    %354 = vmatprep.subr.mxu0 0.0
    %355 = vmatpush1.msra.mxu0 0.0
    %356 = vmatprep.subr.mxu0 0.0
    %357 = vmatpush1.msra.mxu0 0.0
    %358 = vmatprep.subr.mxu0 0.0
    %359 = vmatpush1.msra.mxu0 0.0
    %360 = vmatprep.subr.mxu0 0.0
    %361 = vmatpush1.msra.mxu0 0.0
    %362 = vmatprep.subr.mxu0 0.0
    %363 = vmatpush1.msra.mxu0 0.0
    %364 = vmatprep.subr.mxu0 0.0
    %365 = vmatpush1.msra.mxu0 0.0
    %366 = vmatprep.subr.mxu0 0.0
    %367 = vmatpush1.msra.mxu0 0.0
    %368 = vmatprep.subr.mxu0 0.0
    %369 = vmatpush1.msra.mxu0 0.0
    %370 = vmatprep.subr.mxu0 0.0
    %371 = vmatpush1.msra.mxu0 0.0
    %372 = vmatprep.subr.mxu0 0.0
    %373 = vmatpush1.msra.mxu0 0.0
    %374 = vmatprep.subr.mxu0 0.0
    %375 = vmatpush1.msra.mxu0 0.0
    %376 = vmatprep.mubr.f32.mxu0 0.0
    %377 = vmatmul.mubr.f32.gmra.mrb[0].mxu0 %v265
    %v378 = vpop.f32.mrb[0].mxu0
    %v379 = vadd.f32 0.0, %v378
    %v380 = vpop.f32.mrb[0].mxu0
    %381 = vmatprep.mubr.f32.mxu0 0.0
    %382 = vmatmul.mubr.f32.gmra.mrb[0].mxu0 %v268
    %v383 = vpop.f32.mrb[0].mxu0
    %v384 = vadd.f32 0.0, %v383
    %v385 = vpop.f32.mrb[0].mxu0
    %386 = vmatprep.mubr.f32.mxu0 0.0
    %387 = vmatmul.mubr.f32.gmra.mrb[0].mxu0 %v271
    %v388 = vpop.f32.mrb[0].mxu0
    %v389 = vadd.f32 0.0, %v388
    %v390 = vpop.f32.mrb[0].mxu0
    %391 = vmatprep.mubr.f32.mxu0 0.0
    %392 = vmatmul.mubr.f32.gmra.mrb[0].mxu0 %v274
    %v393 = vpop.f32.mrb[0].mxu0
    %v394 = vadd.f32 0.0, %v393
    %v395 = vpop.f32.mrb[0].mxu0
    %396 = vmatprep.mubr.f32.mxu0 0.0
    %397 = vmatmul.mubr.f32.gmra.mrb[0].mxu0 %v277
    %v398 = vpop.f32.mrb[0].mxu0
    %v399 = vadd.f32 0.0, %v398
    %v400 = vpop.f32.mrb[0].mxu0
    %401 = vmatprep.mubr.f32.mxu0 0.0
    %402 = vmatmul.mubr.f32.gmra.mrb[0].mxu0 %v280
    %v403 = vpop.f32.mrb[0].mxu0
    %v404 = vadd.f32 0.0, %v403
    %v405 = vpop.f32.mrb[0].mxu0
    %406 = vmatprep.mubr.f32.mxu0 0.0
    %407 = vmatmul.mubr.f32.gmra.mrb[0].mxu0 %v283
    %v408 = vpop.f32.mrb[0].mxu0
    %v409 = vadd.f32 0.0, %v408
    %v410 = vpop.f32.mrb[0].mxu0
    %411 = vmatprep.mubr.f32.mxu0 0.0
    %412 = vmatmul.mubr.f32.gmra.mrb[0].mxu0 %v286
    %v413 = vpop.f32.mrb[0].mxu0
    %v414 = vadd.f32 0.0, %v413
    %v415 = vpop.f32.mrb[0].mxu0
    %416 = vmatprep.mubr.f32.mxu0 0.0
    %417 = vmatmul.mubr.f32.gmra.mrb[0].mxu0 %v289
    %v418 = vpop.f32.mrb[0].mxu0
    %v419 = vadd.f32 0.0, %v418
    %v420 = vpop.f32.mrb[0].mxu0
    %421 = vmatprep.mubr.f32.mxu0 0.0
    %422 = vmatmul.mubr.f32.gmra.mrb[0].mxu0 %v292
    %v423 = vpop.f32.mrb[0].mxu0
    %v424 = vadd.f32 0.0, %v423
    %v425 = vpop.f32.mrb[0].mxu0
    %426 = vmatprep.mubr.f32.mxu0 0.0
    %427 = vmatmul.mubr.f32.gmra.mrb[0].mxu0 %v295
    %v428 = vpop.f32.mrb[0].mxu0
    %v429 = vadd.f32 0.0, %v428
    %v430 = vpop.f32.mrb[0].mxu0
    %431 = vmatprep.mubr.f32.mxu0 0.0
    %432 = vmatmul.mubr.f32.gmra.mrb[0].mxu0 %v298
    %v433 = vpop.f32.mrb[0].mxu0
    %v434 = vadd.f32 0.0, %v433
    %v435 = vpop.f32.mrb[0].mxu0
    %436 = vmatprep.mubr.f32.mxu0 0.0
    %437 = vmatmul.mubr.f32.gmra.mrb[0].mxu0 %v301
    %v438 = vpop.f32.mrb[0].mxu0
    %v439 = vadd.f32 0.0, %v438
    %v440 = vpop.f32.mrb[0].mxu0
    %441 = vmatprep.mubr.f32.mxu0 0.0
    %442 = vmatmul.mubr.f32.gmra.mrb[0].mxu0 %v304
    %v443 = vpop.f32.mrb[0].mxu0
    %v444 = vadd.f32 0.0, %v443
    %v445 = vpop.f32.mrb[0].mxu0
    %446 = vmatprep.mubr.f32.mxu0 0.0
    %447 = vmatmul.mubr.f32.gmra.mrb[0].mxu0 %v307
    %v448 = vpop.f32.mrb[0].mxu0
    %v449 = vadd.f32 0.0, %v448
    %v450 = vpop.f32.mrb[0].mxu0
    %451 = vmatprep.mubr.f32.mxu0 0.0
    %452 = vmatmul.mubr.f32.gmra.mrb[0].mxu0 %v310
    %v453 = vpop.f32.mrb[0].mxu0
    %v454 = vadd.f32 0.0, %v453
    %v455 = vpop.f32.mrb[0].mxu0
    %456 = vdwg.mxu0
    %457 = vmax.xlane.f32.xlu0 %v379
    %v458 = vpop.xlane.xlu0 %457
    %459 = vmax.xlane.f32.xlu0 %v384
    %v460 = vpop.xlane.xlu0 %459
    %461 = vmax.xlane.f32.xlu0 %v389
    %v462 = vpop.xlane.xlu0 %461
    %463 = vmax.xlane.f32.xlu0 %v394
    %v464 = vpop.xlane.xlu0 %463
    %465 = vmax.xlane.f32.xlu0 %v399
    %v466 = vpop.xlane.xlu0 %465
    %467 = vmax.xlane.f32.xlu0 %v404
    %v468 = vpop.xlane.xlu0 %467
    %469 = vmax.xlane.f32.xlu0 %v409
    %v470 = vpop.xlane.xlu0 %469
    %471 = vmax.xlane.f32.xlu0 %v414
    %v472 = vpop.xlane.xlu0 %471
    %473 = vmax.xlane.f32.xlu0 %v419
    %v474 = vpop.xlane.xlu0 %473
    %475 = vmax.xlane.f32.xlu0 %v424
    %v476 = vpop.xlane.xlu0 %475
    %477 = vmax.xlane.f32.xlu0 %v429
    %v478 = vpop.xlane.xlu0 %477
    %479 = vmax.xlane.f32.xlu0 %v434
    %v480 = vpop.xlane.xlu0 %479
    %481 = vmax.xlane.f32.xlu0 %v439
    %v482 = vpop.xlane.xlu0 %481
    %483 = vmax.xlane.f32.xlu0 %v444
    %v484 = vpop.xlane.xlu0 %483
    %485 = vmax.xlane.f32.xlu0 %v449
    %v486 = vpop.xlane.xlu0 %485
    %487 = vmax.xlane.f32.xlu0 %v454
    %v488 = vpop.xlane.xlu0 %487
    %v489 = vlaneseq
    %v490 = vand.u32 %v489, 127
    %vm491 = vcmp.eq.f32.partialorder %v379, %v458
    %vm492 = vcmp.eq.f32.partialorder %v384, %v460
    %vm493 = vcmp.eq.f32.partialorder %v389, %v462
    %vm494 = vcmp.eq.f32.partialorder %v394, %v464
    %vm495 = vcmp.eq.f32.partialorder %v399, %v466
    %vm496 = vcmp.eq.f32.partialorder %v404, %v468
    %vm497 = vcmp.eq.f32.partialorder %v409, %v470
    %vm498 = vcmp.eq.f32.partialorder %v414, %v472
    %vm499 = vcmp.eq.f32.partialorder %v419, %v474
    %vm500 = vcmp.eq.f32.partialorder %v424, %v476
    %vm501 = vcmp.eq.f32.partialorder %v429, %v478
    %vm502 = vcmp.eq.f32.partialorder %v434, %v480
    %vm503 = vcmp.eq.f32.partialorder %v439, %v482
    %vm504 = vcmp.eq.f32.partialorder %v444, %v484
    %vm505 = vcmp.eq.f32.partialorder %v449, %v486
    %vm506 = vcmp.eq.f32.partialorder %v454, %v488
    %v507 = vsel %vm491, %v490, 128
    %v508 = vsel %vm492, %v490, 128
    %v509 = vsel %vm493, %v490, 128
    %v510 = vsel %vm494, %v490, 128
    %v511 = vsel %vm495, %v490, 128
    %v512 = vsel %vm496, %v490, 128
    %v513 = vsel %vm497, %v490, 128
    %v514 = vsel %vm498, %v490, 128
    %v515 = vsel %vm499, %v490, 128
    %v516 = vsel %vm500, %v490, 128
    %v517 = vsel %vm501, %v490, 128
    %v518 = vsel %vm502, %v490, 128
    %v519 = vsel %vm503, %v490, 128
    %v520 = vsel %vm504, %v490, 128
    %v521 = vsel %vm505, %v490, 128
    %v522 = vsel %vm506, %v490, 128
    %v523 = vand.u32 %v507, 65535
    %v524 = vshra.s32 %v507, 16
    %v525 = vcvt.s32.f32 %v523
    %v526 = vcvt.s32.f32 %v524
    %527 = vmin.xlane.f32.xlu0 %v526
    %v528 = vpop.xlane.xlu0 %527
    %vm529 = vcmp.eq.f32.partialorder %v526, %v528
    %v530 = vsel %vm529, %v525, inf
    %531 = vmin.xlane.f32.xlu0 %v530
    %v532 = vpop.xlane.xlu0 %531
    %v533 = vcvt.f32.s32 %v532
    %v534 = vcvt.f32.s32 %v528
    %v535 = vshll.u32 %v534, 16
    %v536 = vadd.s32 %v535, %v533
    %v537 = vand.u32 %v508, 65535
    %v538 = vshra.s32 %v508, 16
    %v539 = vcvt.s32.f32 %v537
    %v540 = vcvt.s32.f32 %v538
    %541 = vmin.xlane.f32.xlu0 %v540
    %v542 = vpop.xlane.xlu0 %541
    %vm543 = vcmp.eq.f32.partialorder %v540, %v542
    %v544 = vsel %vm543, %v539, inf
    %545 = vmin.xlane.f32.xlu0 %v544
    %v546 = vpop.xlane.xlu0 %545
    %v547 = vcvt.f32.s32 %v546
    %v548 = vcvt.f32.s32 %v542
    %v549 = vshll.u32 %v548, 16
    %v550 = vadd.s32 %v549, %v547
    %v551 = vand.u32 %v509, 65535
    %v552 = vshra.s32 %v509, 16
    %v553 = vcvt.s32.f32 %v551
    %v554 = vcvt.s32.f32 %v552
    %555 = vmin.xlane.f32.xlu0 %v554
    %v556 = vpop.xlane.xlu0 %555
    %vm557 = vcmp.eq.f32.partialorder %v554, %v556
    %v558 = vsel %vm557, %v553, inf
    %559 = vmin.xlane.f32.xlu0 %v558
    %v560 = vpop.xlane.xlu0 %559
    %v561 = vcvt.f32.s32 %v560
    %v562 = vcvt.f32.s32 %v556
    %v563 = vshll.u32 %v562, 16
    %v564 = vadd.s32 %v563, %v561
    %v565 = vand.u32 %v510, 65535
    %v566 = vshra.s32 %v510, 16
    %v567 = vcvt.s32.f32 %v565
    %v568 = vcvt.s32.f32 %v566
    %569 = vmin.xlane.f32.xlu0 %v568
    %v570 = vpop.xlane.xlu0 %569
    %vm571 = vcmp.eq.f32.partialorder %v568, %v570
    %v572 = vsel %vm571, %v567, inf
    %573 = vmin.xlane.f32.xlu0 %v572
    %v574 = vpop.xlane.xlu0 %573
    %v575 = vcvt.f32.s32 %v574
    %v576 = vcvt.f32.s32 %v570
    %v577 = vshll.u32 %v576, 16
    %v578 = vadd.s32 %v577, %v575
    %v579 = vand.u32 %v511, 65535
    %v580 = vshra.s32 %v511, 16
    %v581 = vcvt.s32.f32 %v579
    %v582 = vcvt.s32.f32 %v580
    %583 = vmin.xlane.f32.xlu0 %v582
    %v584 = vpop.xlane.xlu0 %583
    %vm585 = vcmp.eq.f32.partialorder %v582, %v584
    %v586 = vsel %vm585, %v581, inf
    %587 = vmin.xlane.f32.xlu0 %v586
    %v588 = vpop.xlane.xlu0 %587
    %v589 = vcvt.f32.s32 %v588
    %v590 = vcvt.f32.s32 %v584
    %v591 = vshll.u32 %v590, 16
    %v592 = vadd.s32 %v591, %v589
    %v593 = vand.u32 %v512, 65535
    %v594 = vshra.s32 %v512, 16
    %v595 = vcvt.s32.f32 %v593
    %v596 = vcvt.s32.f32 %v594
    %597 = vmin.xlane.f32.xlu0 %v596
    %v598 = vpop.xlane.xlu0 %597
    %vm599 = vcmp.eq.f32.partialorder %v596, %v598
    %v600 = vsel %vm599, %v595, inf
    %601 = vmin.xlane.f32.xlu0 %v600
    %v602 = vpop.xlane.xlu0 %601
    %v603 = vcvt.f32.s32 %v602
    %v604 = vcvt.f32.s32 %v598
    %v605 = vshll.u32 %v604, 16
    %v606 = vadd.s32 %v605, %v603
    %v607 = vand.u32 %v513, 65535
    %v608 = vshra.s32 %v513, 16
    %v609 = vcvt.s32.f32 %v607
    %v610 = vcvt.s32.f32 %v608
    %611 = vmin.xlane.f32.xlu0 %v610
    %v612 = vpop.xlane.xlu0 %611
    %vm613 = vcmp.eq.f32.partialorder %v610, %v612
    %v614 = vsel %vm613, %v609, inf
    %615 = vmin.xlane.f32.xlu0 %v614
    %v616 = vpop.xlane.xlu0 %615
    %v617 = vcvt.f32.s32 %v616
    %v618 = vcvt.f32.s32 %v612
    %v619 = vshll.u32 %v618, 16
    %v620 = vadd.s32 %v619, %v617
    %v621 = vand.u32 %v514, 65535
    %v622 = vshra.s32 %v514, 16
    %v623 = vcvt.s32.f32 %v621
    %v624 = vcvt.s32.f32 %v622
    %625 = vmin.xlane.f32.xlu0 %v624
    %v626 = vpop.xlane.xlu0 %625
    %vm627 = vcmp.eq.f32.partialorder %v624, %v626
    %v628 = vsel %vm627, %v623, inf
    %629 = vmin.xlane.f32.xlu0 %v628
    %v630 = vpop.xlane.xlu0 %629
    %v631 = vcvt.f32.s32 %v630
    %v632 = vcvt.f32.s32 %v626
    %v633 = vshll.u32 %v632, 16
    %v634 = vadd.s32 %v633, %v631
    %v635 = vand.u32 %v515, 65535
    %v636 = vshra.s32 %v515, 16
    %v637 = vcvt.s32.f32 %v635
    %v638 = vcvt.s32.f32 %v636
    %639 = vmin.xlane.f32.xlu0 %v638
    %v640 = vpop.xlane.xlu0 %639
    %vm641 = vcmp.eq.f32.partialorder %v638, %v640
    %v642 = vsel %vm641, %v637, inf
    %643 = vmin.xlane.f32.xlu0 %v642
    %v644 = vpop.xlane.xlu0 %643
    %v645 = vcvt.f32.s32 %v644
    %v646 = vcvt.f32.s32 %v640
    %v647 = vshll.u32 %v646, 16
    %v648 = vadd.s32 %v647, %v645
    %v649 = vand.u32 %v516, 65535
    %v650 = vshra.s32 %v516, 16
    %v651 = vcvt.s32.f32 %v649
    %v652 = vcvt.s32.f32 %v650
    %653 = vmin.xlane.f32.xlu0 %v652
    %v654 = vpop.xlane.xlu0 %653
    %vm655 = vcmp.eq.f32.partialorder %v652, %v654
    %v656 = vsel %vm655, %v651, inf
    %657 = vmin.xlane.f32.xlu0 %v656
    %v658 = vpop.xlane.xlu0 %657
    %v659 = vcvt.f32.s32 %v658
    %v660 = vcvt.f32.s32 %v654
    %v661 = vshll.u32 %v660, 16
    %v662 = vadd.s32 %v661, %v659
    %v663 = vand.u32 %v517, 65535
    %v664 = vshra.s32 %v517, 16
    %v665 = vcvt.s32.f32 %v663
    %v666 = vcvt.s32.f32 %v664
    %667 = vmin.xlane.f32.xlu0 %v666
    %v668 = vpop.xlane.xlu0 %667
    %vm669 = vcmp.eq.f32.partialorder %v666, %v668
    %v670 = vsel %vm669, %v665, inf
    %671 = vmin.xlane.f32.xlu0 %v670
    %v672 = vpop.xlane.xlu0 %671
    %v673 = vcvt.f32.s32 %v672
    %v674 = vcvt.f32.s32 %v668
    %v675 = vshll.u32 %v674, 16
    %v676 = vadd.s32 %v675, %v673
    %v677 = vand.u32 %v518, 65535
    %v678 = vshra.s32 %v518, 16
    %v679 = vcvt.s32.f32 %v677
    %v680 = vcvt.s32.f32 %v678
    %681 = vmin.xlane.f32.xlu0 %v680
    %v682 = vpop.xlane.xlu0 %681
    %vm683 = vcmp.eq.f32.partialorder %v680, %v682
    %v684 = vsel %vm683, %v679, inf
    %685 = vmin.xlane.f32.xlu0 %v684
    %v686 = vpop.xlane.xlu0 %685
    %v687 = vcvt.f32.s32 %v686
    %v688 = vcvt.f32.s32 %v682
    %v689 = vshll.u32 %v688, 16
    %v690 = vadd.s32 %v689, %v687
    %v691 = vand.u32 %v519, 65535
    %v692 = vshra.s32 %v519, 16
    %v693 = vcvt.s32.f32 %v691
    %v694 = vcvt.s32.f32 %v692
    %695 = vmin.xlane.f32.xlu0 %v694
    %v696 = vpop.xlane.xlu0 %695
    %vm697 = vcmp.eq.f32.partialorder %v694, %v696
    %v698 = vsel %vm697, %v693, inf
    %699 = vmin.xlane.f32.xlu0 %v698
    %v700 = vpop.xlane.xlu0 %699
    %v701 = vcvt.f32.s32 %v700
    %v702 = vcvt.f32.s32 %v696
    %v703 = vshll.u32 %v702, 16
    %v704 = vadd.s32 %v703, %v701
    %v705 = vand.u32 %v520, 65535
    %v706 = vshra.s32 %v520, 16
    %v707 = vcvt.s32.f32 %v705
    %v708 = vcvt.s32.f32 %v706
    %709 = vmin.xlane.f32.xlu0 %v708
    %v710 = vpop.xlane.xlu0 %709
    %vm711 = vcmp.eq.f32.partialorder %v708, %v710
    %v712 = vsel %vm711, %v707, inf
    %713 = vmin.xlane.f32.xlu0 %v712
    %v714 = vpop.xlane.xlu0 %713
    %v715 = vcvt.f32.s32 %v714
    %v716 = vcvt.f32.s32 %v710
    %v717 = vshll.u32 %v716, 16
    %v718 = vadd.s32 %v717, %v715
    %v719 = vand.u32 %v521, 65535
    %v720 = vshra.s32 %v521, 16
    %v721 = vcvt.s32.f32 %v719
    %v722 = vcvt.s32.f32 %v720
    %723 = vmin.xlane.f32.xlu0 %v722
    %v724 = vpop.xlane.xlu0 %723
    %vm725 = vcmp.eq.f32.partialorder %v722, %v724
    %v726 = vsel %vm725, %v721, inf
    %727 = vmin.xlane.f32.xlu0 %v726
    %v728 = vpop.xlane.xlu0 %727
    %v729 = vcvt.f32.s32 %v728
    %v730 = vcvt.f32.s32 %v724
    %v731 = vshll.u32 %v730, 16
    %v732 = vadd.s32 %v731, %v729
    %v733 = vand.u32 %v522, 65535
    %v734 = vshra.s32 %v522, 16
    %v735 = vcvt.s32.f32 %v733
    %v736 = vcvt.s32.f32 %v734
    %737 = vmin.xlane.f32.xlu0 %v736
    %v738 = vpop.xlane.xlu0 %737
    %vm739 = vcmp.eq.f32.partialorder %v736, %v738
    %v740 = vsel %vm739, %v735, inf
    %741 = vmin.xlane.f32.xlu0 %v740
    %v742 = vpop.xlane.xlu0 %741
    %v743 = vcvt.f32.s32 %v742
    %v744 = vcvt.f32.s32 %v738
    %v745 = vshll.u32 %v744, 16
    %v746 = vadd.s32 %v745, %v743
    %v747 = vlaneseq
    %v748 = vshrl.u32 %v747, 7
    %v749 = vsub.s32 %v490, %v748
    %v750 = vrot.slane %v536, %v749
    %v751 = vadd.s32 %v490, 4294967288
    %v752 = vlaneseq
    %v753 = vshrl.u32 %v752, 7
    %v754 = vsub.s32 %v751, %v753
    %v755 = vrot.slane %v550, %v754
    %vm756 = vcmask 130112
    %v757 = vsel %vm756, %v755, %v750
    %v758 = vadd.s32 %v490, 4294967280
    %v759 = vlaneseq
    %v760 = vshrl.u32 %v759, 7
    %v761 = vsub.s32 %v758, %v760
    %v762 = vrot.slane %v564, %v761
    %vm763 = vcmask 195712
    %v764 = vsel %vm763, %v762, %v757
    %v765 = vadd.s32 %v490, 4294967272
    %v766 = vlaneseq
    %v767 = vshrl.u32 %v766, 7
    %v768 = vsub.s32 %v765, %v767
    %v769 = vrot.slane %v578, %v768
    %vm770 = vcmask 261312
    %v771 = vsel %vm770, %v769, %v764
    %v772 = vadd.s32 %v490, 4294967264
    %v773 = vlaneseq
    %v774 = vshrl.u32 %v773, 7
    %v775 = vsub.s32 %v772, %v774
    %v776 = vrot.slane %v592, %v775
    %vm777 = vcmask 326912
    %v778 = vsel %vm777, %v776, %v771
    %v779 = vadd.s32 %v490, 4294967256
    %v780 = vlaneseq
    %v781 = vshrl.u32 %v780, 7
    %v782 = vsub.s32 %v779, %v781
    %v783 = vrot.slane %v606, %v782
    %vm784 = vcmask 392512
    %v785 = vsel %vm784, %v783, %v778
    %v786 = vadd.s32 %v490, 4294967248
    %v787 = vlaneseq
    %v788 = vshrl.u32 %v787, 7
    %v789 = vsub.s32 %v786, %v788
    %v790 = vrot.slane %v620, %v789
    %vm791 = vcmask 458112
    %v792 = vsel %vm791, %v790, %v785
    %v793 = vadd.s32 %v490, 4294967240
    %v794 = vlaneseq
    %v795 = vshrl.u32 %v794, 7
    %v796 = vsub.s32 %v793, %v795
    %v797 = vrot.slane %v634, %v796
    %vm798 = vcmask 523712
    %v799 = vsel %vm798, %v797, %v792
    %v800 = vadd.s32 %v490, 4294967232
    %v801 = vlaneseq
    %v802 = vshrl.u32 %v801, 7
    %v803 = vsub.s32 %v800, %v802
    %v804 = vrot.slane %v648, %v803
    %vm805 = vcmask 589312
    %v806 = vsel %vm805, %v804, %v799
    %v807 = vadd.s32 %v490, 4294967224
    %v808 = vlaneseq
    %v809 = vshrl.u32 %v808, 7
    %v810 = vsub.s32 %v807, %v809
    %v811 = vrot.slane %v662, %v810
    %vm812 = vcmask 654912
    %v813 = vsel %vm812, %v811, %v806
    %v814 = vadd.s32 %v490, 4294967216
    %v815 = vlaneseq
    %v816 = vshrl.u32 %v815, 7
    %v817 = vsub.s32 %v814, %v816
    %v818 = vrot.slane %v676, %v817
    %vm819 = vcmask 720512
    %v820 = vsel %vm819, %v818, %v813
    %v821 = vadd.s32 %v490, 4294967208
    %v822 = vlaneseq
    %v823 = vshrl.u32 %v822, 7
    %v824 = vsub.s32 %v821, %v823
    %v825 = vrot.slane %v690, %v824
    %vm826 = vcmask 786112
    %v827 = vsel %vm826, %v825, %v820
    %v828 = vadd.s32 %v490, 4294967200
    %v829 = vlaneseq
    %v830 = vshrl.u32 %v829, 7
    %v831 = vsub.s32 %v828, %v830
    %v832 = vrot.slane %v704, %v831
    %vm833 = vcmask 851712
    %v834 = vsel %vm833, %v832, %v827
    %v835 = vadd.s32 %v490, 4294967192
    %v836 = vlaneseq
    %v837 = vshrl.u32 %v836, 7
    %v838 = vsub.s32 %v835, %v837
    %v839 = vrot.slane %v718, %v838
    %vm840 = vcmask 917312
    %v841 = vsel %vm840, %v839, %v834
    %v842 = vadd.s32 %v490, 4294967184
    %v843 = vlaneseq
    %v844 = vshrl.u32 %v843, 7
    %v845 = vsub.s32 %v842, %v844
    %v846 = vrot.slane %v732, %v845
    %vm847 = vcmask 982912
    %v848 = vsel %vm847, %v846, %v841
    %v849 = vadd.s32 %v490, 4294967176
    %v850 = vlaneseq
    %v851 = vshrl.u32 %v850, 7
    %v852 = vsub.s32 %v849, %v851
    %v853 = vrot.slane %v746, %v852
    %vm854 = vcmask 1048512
    %v855 = vsel %vm854, %v853, %v848
    %856 = vst [vmem:[#allocation2] sm:$0x1] %v855
    %vm857 = vcmp.eq.s32.totalorder %v490, %v536
    %vm858 = vcmp.eq.s32.totalorder %v490, %v550
    %vm859 = vcmp.eq.s32.totalorder %v490, %v564
    %vm860 = vcmp.eq.s32.totalorder %v490, %v578
    %vm861 = vcmp.eq.s32.totalorder %v490, %v592
    %vm862 = vcmp.eq.s32.totalorder %v490, %v606
    %vm863 = vcmp.eq.s32.totalorder %v490, %v620
    %vm864 = vcmp.eq.s32.totalorder %v490, %v634
    %vm865 = vcmp.eq.s32.totalorder %v490, %v648
    %vm866 = vcmp.eq.s32.totalorder %v490, %v662
    %vm867 = vcmp.eq.s32.totalorder %v490, %v676
    %vm868 = vcmp.eq.s32.totalorder %v490, %v690
    %vm869 = vcmp.eq.s32.totalorder %v490, %v704
    %vm870 = vcmp.eq.s32.totalorder %v490, %v718
    %vm871 = vcmp.eq.s32.totalorder %v490, %v732
    %vm872 = vcmp.eq.s32.totalorder %v490, %v746
    %v873 = vsel %vm857, 1, 0
    %v874 = vsel %vm858, 1, 0
    %v875 = vsel %vm859, 1, 0
    %v876 = vsel %vm860, 1, 0
    %v877 = vsel %vm861, 1, 0
    %v878 = vsel %vm862, 1, 0
    %v879 = vsel %vm863, 1, 0
    %v880 = vsel %vm864, 1, 0
    %v881 = vsel %vm865, 1, 0
    %v882 = vsel %vm866, 1, 0
    %v883 = vsel %vm867, 1, 0
    %v884 = vsel %vm868, 1, 0
    %v885 = vsel %vm869, 1, 0
    %v886 = vsel %vm870, 1, 0
    %v887 = vsel %vm871, 1, 0
    %v888 = vsel %vm872, 1, 0
    %v889 = vcvt.s32.f32 %v873
    %v890 = vcvt.s32.f32 %v874
    %v891 = vcvt.s32.f32 %v875
    %v892 = vcvt.s32.f32 %v876
    %v893 = vcvt.s32.f32 %v877
    %v894 = vcvt.s32.f32 %v878
    %v895 = vcvt.s32.f32 %v879
    %v896 = vcvt.s32.f32 %v880
    %v897 = vcvt.s32.f32 %v881
    %v898 = vcvt.s32.f32 %v882
    %v899 = vcvt.s32.f32 %v883
    %v900 = vcvt.s32.f32 %v884
    %v901 = vcvt.s32.f32 %v885
    %v902 = vcvt.s32.f32 %v886
    %v903 = vcvt.s32.f32 %v887
    %v904 = vcvt.s32.f32 %v888
    %v905 = vld [vmem:[%s2] sm:$0xff]
    %v906 = vld [vmem:[%s2 + $0x8] sm:$0xff]
    %v907 = vld [vmem:[%s2 + $0x10] sm:$0xff]
    %v908 = vld [vmem:[%s2 + $0x18] sm:$0xff]
    %v909 = vld [vmem:[%s2 + $0x20] sm:$0xff]
    %v910 = vld [vmem:[%s2 + $0x28] sm:$0xff]
    %v911 = vld [vmem:[%s2 + $0x30] sm:$0xff]
    %v912 = vld [vmem:[%s2 + $0x38] sm:$0xff]
    %v913 = vld [vmem:[%s2 + $0x40] sm:$0xff]
    %v914 = vld [vmem:[%s2 + $0x48] sm:$0xff]
    %v915 = vld [vmem:[%s2 + $0x50] sm:$0xff]
    %v916 = vld [vmem:[%s2 + $0x58] sm:$0xff]
    %v917 = vld [vmem:[%s2 + $0x60] sm:$0xff]
    %v918 = vld [vmem:[%s2 + $0x68] sm:$0xff]
    %v919 = vld [vmem:[%s2 + $0x70] sm:$0xff]
    %v920 = vld [vmem:[%s2 + $0x78] sm:$0xff]
    %921 = vmatprep.subr.mxu0 0.0
    %922 = vmatpush1.msra.mxu0 %v905
    %923 = vmatprep.subr.mxu0 0.0
    %924 = vmatpush1.msra.mxu0 %v906
    %925 = vmatprep.subr.mxu0 0.0
    %926 = vmatpush1.msra.mxu0 %v907
    %927 = vmatprep.subr.mxu0 0.0
    %928 = vmatpush1.msra.mxu0 %v908
    %929 = vmatprep.subr.mxu0 0.0
    %930 = vmatpush1.msra.mxu0 %v909
    %931 = vmatprep.subr.mxu0 0.0
    %932 = vmatpush1.msra.mxu0 %v910
    %933 = vmatprep.subr.mxu0 0.0
    %934 = vmatpush1.msra.mxu0 %v911
    %935 = vmatprep.subr.mxu0 0.0
    %936 = vmatpush1.msra.mxu0 %v912
    %937 = vmatprep.subr.mxu0 0.0
    %938 = vmatpush1.msra.mxu0 %v913
    %939 = vmatprep.subr.mxu0 0.0
    %940 = vmatpush1.msra.mxu0 %v914
    %941 = vmatprep.subr.mxu0 0.0
    %942 = vmatpush1.msra.mxu0 %v915
    %943 = vmatprep.subr.mxu0 0.0
    %944 = vmatpush1.msra.mxu0 %v916
    %945 = vmatprep.subr.mxu0 0.0
    %946 = vmatpush1.msra.mxu0 %v917
    %947 = vmatprep.subr.mxu0 0.0
    %948 = vmatpush1.msra.mxu0 %v918
    %949 = vmatprep.subr.mxu0 0.0
    %950 = vmatpush1.msra.mxu0 %v919
    %951 = vmatprep.subr.mxu0 0.0
    %952 = vmatpush1.msra.mxu0 %v920
    %953 = vmatprep.subr.mxu0 0.0
    %954 = vmatpush1.msra.mxu0 0.0
    %955 = vmatprep.subr.mxu0 0.0
    %956 = vmatpush1.msra.mxu0 0.0
    %957 = vmatprep.subr.mxu0 0.0
    %958 = vmatpush1.msra.mxu0 0.0
    %959 = vmatprep.subr.mxu0 0.0
    %960 = vmatpush1.msra.mxu0 0.0
    %961 = vmatprep.subr.mxu0 0.0
    %962 = vmatpush1.msra.mxu0 0.0
    %963 = vmatprep.subr.mxu0 0.0
    %964 = vmatpush1.msra.mxu0 0.0
    %965 = vmatprep.subr.mxu0 0.0
    %966 = vmatpush1.msra.mxu0 0.0
    %967 = vmatprep.subr.mxu0 0.0
    %968 = vmatpush1.msra.mxu0 0.0
    %969 = vmatprep.subr.mxu0 0.0
    %970 = vmatpush1.msra.mxu0 0.0
    %971 = vmatprep.subr.mxu0 0.0
    %972 = vmatpush1.msra.mxu0 0.0
    %973 = vmatprep.subr.mxu0 0.0
    %974 = vmatpush1.msra.mxu0 0.0
    %975 = vmatprep.subr.mxu0 0.0
    %976 = vmatpush1.msra.mxu0 0.0
    %977 = vmatprep.subr.mxu0 0.0
    %978 = vmatpush1.msra.mxu0 0.0
    %979 = vmatprep.subr.mxu0 0.0
    %980 = vmatpush1.msra.mxu0 0.0
    %981 = vmatprep.subr.mxu0 0.0
    %982 = vmatpush1.msra.mxu0 0.0
    %983 = vmatprep.subr.mxu0 0.0
    %984 = vmatpush1.msra.mxu0 0.0
    %985 = vmatprep.mubr.f32.mxu0 0.0
    %986 = vmatmul.mubr.f32.gmra.mrb[0].mxu0 %v889
    %v987 = vpop.f32.mrb[0].mxu0
    %v988 = vadd.f32 0.0, %v987
    %v989 = vpop.f32.mrb[0].mxu0
    %990 = vmatprep.mubr.f32.mxu0 0.0
    %991 = vmatmul.mubr.f32.gmra.mrb[0].mxu0 %v890
    %v992 = vpop.f32.mrb[0].mxu0
    %v993 = vadd.f32 0.0, %v992
    %v994 = vpop.f32.mrb[0].mxu0
    %995 = vmatprep.mubr.f32.mxu0 0.0
    %996 = vmatmul.mubr.f32.gmra.mrb[0].mxu0 %v891
    %v997 = vpop.f32.mrb[0].mxu0
    %v998 = vadd.f32 0.0, %v997
    %v999 = vpop.f32.mrb[0].mxu0
    %1000 = vmatprep.mubr.f32.mxu0 0.0
    %1001 = vmatmul.mubr.f32.gmra.mrb[0].mxu0 %v892
    %v1002 = vpop.f32.mrb[0].mxu0
    %v1003 = vadd.f32 0.0, %v1002
    %v1004 = vpop.f32.mrb[0].mxu0
    %1005 = vmatprep.mubr.f32.mxu0 0.0
    %1006 = vmatmul.mubr.f32.gmra.mrb[0].mxu0 %v893
    %v1007 = vpop.f32.mrb[0].mxu0
    %v1008 = vadd.f32 0.0, %v1007
    %v1009 = vpop.f32.mrb[0].mxu0
    %1010 = vmatprep.mubr.f32.mxu0 0.0
    %1011 = vmatmul.mubr.f32.gmra.mrb[0].mxu0 %v894
    %v1012 = vpop.f32.mrb[0].mxu0
    %v1013 = vadd.f32 0.0, %v1012
    %v1014 = vpop.f32.mrb[0].mxu0
    %1015 = vmatprep.mubr.f32.mxu0 0.0
    %1016 = vmatmul.mubr.f32.gmra.mrb[0].mxu0 %v895
    %v1017 = vpop.f32.mrb[0].mxu0
    %v1018 = vadd.f32 0.0, %v1017
    %v1019 = vpop.f32.mrb[0].mxu0
    %1020 = vmatprep.mubr.f32.mxu0 0.0
    %1021 = vmatmul.mubr.f32.gmra.mrb[0].mxu0 %v896
    %v1022 = vpop.f32.mrb[0].mxu0
    %v1023 = vadd.f32 0.0, %v1022
    %v1024 = vpop.f32.mrb[0].mxu0
    %1025 = vmatprep.mubr.f32.mxu0 0.0
    %1026 = vmatmul.mubr.f32.gmra.mrb[0].mxu0 %v897
    %v1027 = vpop.f32.mrb[0].mxu0
    %v1028 = vadd.f32 0.0, %v1027
    %v1029 = vpop.f32.mrb[0].mxu0
    %1030 = vmatprep.mubr.f32.mxu0 0.0
    %1031 = vmatmul.mubr.f32.gmra.mrb[0].mxu0 %v898
    %v1032 = vpop.f32.mrb[0].mxu0
    %v1033 = vadd.f32 0.0, %v1032
    %v1034 = vpop.f32.mrb[0].mxu0
    %1035 = vmatprep.mubr.f32.mxu0 0.0
    %1036 = vmatmul.mubr.f32.gmra.mrb[0].mxu0 %v899
    %v1037 = vpop.f32.mrb[0].mxu0
    %v1038 = vadd.f32 0.0, %v1037
    %v1039 = vpop.f32.mrb[0].mxu0
    %1040 = vmatprep.mubr.f32.mxu0 0.0
    %1041 = vmatmul.mubr.f32.gmra.mrb[0].mxu0 %v900
    %v1042 = vpop.f32.mrb[0].mxu0
    %v1043 = vadd.f32 0.0, %v1042
    %v1044 = vpop.f32.mrb[0].mxu0
    %1045 = vmatprep.mubr.f32.mxu0 0.0
    %1046 = vmatmul.mubr.f32.gmra.mrb[0].mxu0 %v901
    %v1047 = vpop.f32.mrb[0].mxu0
    %v1048 = vadd.f32 0.0, %v1047
    %v1049 = vpop.f32.mrb[0].mxu0
    %1050 = vmatprep.mubr.f32.mxu0 0.0
    %1051 = vmatmul.mubr.f32.gmra.mrb[0].mxu0 %v902
    %v1052 = vpop.f32.mrb[0].mxu0
    %v1053 = vadd.f32 0.0, %v1052
    %v1054 = vpop.f32.mrb[0].mxu0
    %1055 = vmatprep.mubr.f32.mxu0 0.0
    %1056 = vmatmul.mubr.f32.gmra.mrb[0].mxu0 %v903
    %v1057 = vpop.f32.mrb[0].mxu0
    %v1058 = vadd.f32 0.0, %v1057
    %v1059 = vpop.f32.mrb[0].mxu0
    %1060 = vmatprep.mubr.f32.mxu0 0.0
    %1061 = vmatmul.mubr.f32.gmra.mrb[0].mxu0 %v904
    %v1062 = vpop.f32.mrb[0].mxu0
    %v1063 = vadd.f32 0.0, %v1062
    %v1064 = vpop.f32.mrb[0].mxu0
    %1065 = vdwg.mxu0
    %1066 = vst.msk [vmem:[%s3] sm:$0xff] %vm51, %v988
    %1067 = vst.msk [vmem:[%s3 + $0x8] sm:$0xff] %vm51, %v993
    %1068 = vst.msk [vmem:[%s3 + $0x10] sm:$0xff] %vm51, %v998
    %1069 = vst.msk [vmem:[%s3 + $0x18] sm:$0xff] %vm51, %v1003
    %1070 = vst.msk [vmem:[%s3 + $0x20] sm:$0xff] %vm51, %v1008
    %1071 = vst.msk [vmem:[%s3 + $0x28] sm:$0xff] %vm51, %v1013
    %1072 = vst.msk [vmem:[%s3 + $0x30] sm:$0xff] %vm51, %v1018
    %1073 = vst.msk [vmem:[%s3 + $0x38] sm:$0xff] %vm51, %v1023
    %1074 = vst.msk [vmem:[%s3 + $0x40] sm:$0xff] %vm51, %v1028
    %1075 = vst.msk [vmem:[%s3 + $0x48] sm:$0xff] %vm51, %v1033
    %1076 = vst.msk [vmem:[%s3 + $0x50] sm:$0xff] %vm51, %v1038
    %1077 = vst.msk [vmem:[%s3 + $0x58] sm:$0xff] %vm51, %v1043
    %1078 = vst.msk [vmem:[%s3 + $0x60] sm:$0xff] %vm51, %v1048
    %1079 = vst.msk [vmem:[%s3 + $0x68] sm:$0xff] %vm51, %v1053
    %1080 = vst.msk [vmem:[%s3 + $0x70] sm:$0xff] %vm51, %v1058
    %1081 = vst.msk [vmem:[%s3 + $0x78] sm:$0xff] %vm51, %v1063
    %v1082 = vlaneseq
    %v1083 = vshrl.u32 %v1082, 7
    %v1084 = vadd.s32 %v1083, 8
    %v1085 = vadd.s32 %v1083, 16
    %v1086 = vadd.s32 %v1083, 24
    %v1087 = vadd.s32 %v1083, 32
    %v1088 = vadd.s32 %v1083, 40
    %v1089 = vadd.s32 %v1083, 48
    %v1090 = vadd.s32 %v1083, 56
    %v1091 = vadd.s32 %v1083, 64
    %v1092 = vadd.s32 %v1083, 72
    %v1093 = vadd.s32 %v1083, 80
    %v1094 = vadd.s32 %v1083, 88
    %v1095 = vadd.s32 %v1083, 96
    %v1096 = vadd.s32 %v1083, 104
    %v1097 = vadd.s32 %v1083, 112
    %v1098 = vadd.s32 %v1083, 120
    %s1099 = smul.u32 0, 128
    %v1100 = vstv %s1099
    %v1101 = vadd.s32 %v1100, %v1083
    %v1102 = vadd.s32 %v1100, %v1084
    %v1103 = vadd.s32 %v1100, %v1085
    %v1104 = vadd.s32 %v1100, %v1086
    %v1105 = vadd.s32 %v1100, %v1087
    %v1106 = vadd.s32 %v1100, %v1088
    %v1107 = vadd.s32 %v1100, %v1089
    %v1108 = vadd.s32 %v1100, %v1090
    %v1109 = vadd.s32 %v1100, %v1091
    %v1110 = vadd.s32 %v1100, %v1092
    %v1111 = vadd.s32 %v1100, %v1093
    %v1112 = vadd.s32 %v1100, %v1094
    %v1113 = vadd.s32 %v1100, %v1095
    %v1114 = vadd.s32 %v1100, %v1096
    %v1115 = vadd.s32 %v1100, %v1097
    %v1116 = vadd.s32 %v1100, %v1098
    %vm1117 = vcmp.lt.s32.totalorder %v1101, 128
    %vm1118 = vcmp.lt.s32.totalorder %v1102, 128
    %vm1119 = vcmp.lt.s32.totalorder %v1103, 128
    %vm1120 = vcmp.lt.s32.totalorder %v1104, 128
    %vm1121 = vcmp.lt.s32.totalorder %v1105, 128
    %vm1122 = vcmp.lt.s32.totalorder %v1106, 128
    %vm1123 = vcmp.lt.s32.totalorder %v1107, 128
    %vm1124 = vcmp.lt.s32.totalorder %v1108, 128
    %vm1125 = vcmp.lt.s32.totalorder %v1109, 128
    %vm1126 = vcmp.lt.s32.totalorder %v1110, 128
    %vm1127 = vcmp.lt.s32.totalorder %v1111, 128
    %vm1128 = vcmp.lt.s32.totalorder %v1112, 128
    %vm1129 = vcmp.lt.s32.totalorder %v1113, 128
    %vm1130 = vcmp.lt.s32.totalorder %v1114, 128
    %vm1131 = vcmp.lt.s32.totalorder %v1115, 128
    %vm1132 = vcmp.lt.s32.totalorder %v1116, 128
    %v1133 = vsel %vm1117, 1, 0
    %v1134 = vsel %vm1118, 1, 0
    %v1135 = vsel %vm1119, 1, 0
    %v1136 = vsel %vm1120, 1, 0
    %v1137 = vsel %vm1121, 1, 0
    %v1138 = vsel %vm1122, 1, 0
    %v1139 = vsel %vm1123, 1, 0
    %v1140 = vsel %vm1124, 1, 0
    %v1141 = vsel %vm1125, 1, 0
    %v1142 = vsel %vm1126, 1, 0
    %v1143 = vsel %vm1127, 1, 0
    %v1144 = vsel %vm1128, 1, 0
    %v1145 = vsel %vm1129, 1, 0
    %v1146 = vsel %vm1130, 1, 0
    %v1147 = vsel %vm1131, 1, 0
    %v1148 = vsel %vm1132, 1, 0
    %vm1149 = vcmp.eq.s32.totalorder %v1133, 1
    %vm1150 = vcmp.eq.s32.totalorder %v1134, 1
    %vm1151 = vcmp.eq.s32.totalorder %v1135, 1
    %vm1152 = vcmp.eq.s32.totalorder %v1136, 1
    %vm1153 = vcmp.eq.s32.totalorder %v1137, 1
    %vm1154 = vcmp.eq.s32.totalorder %v1138, 1
    %vm1155 = vcmp.eq.s32.totalorder %v1139, 1
    %vm1156 = vcmp.eq.s32.totalorder %v1140, 1
    %vm1157 = vcmp.eq.s32.totalorder %v1141, 1
    %vm1158 = vcmp.eq.s32.totalorder %v1142, 1
    %vm1159 = vcmp.eq.s32.totalorder %v1143, 1
    %vm1160 = vcmp.eq.s32.totalorder %v1144, 1
    %vm1161 = vcmp.eq.s32.totalorder %v1145, 1
    %vm1162 = vcmp.eq.s32.totalorder %v1146, 1
    %vm1163 = vcmp.eq.s32.totalorder %v1147, 1
    %vm1164 = vcmp.eq.s32.totalorder %v1148, 1
    %v1165 = vsel %vm1149, %v889, 0.0
    %v1166 = vsel %vm1150, %v890, 0.0
    %v1167 = vsel %vm1151, %v891, 0.0
    %v1168 = vsel %vm1152, %v892, 0.0
    %v1169 = vsel %vm1153, %v893, 0.0
    %v1170 = vsel %vm1154, %v894, 0.0
    %v1171 = vsel %vm1155, %v895, 0.0
    %v1172 = vsel %vm1156, %v896, 0.0
    %v1173 = vsel %vm1157, %v897, 0.0
    %v1174 = vsel %vm1158, %v898, 0.0
    %v1175 = vsel %vm1159, %v899, 0.0
    %v1176 = vsel %vm1160, %v900, 0.0
    %v1177 = vsel %vm1161, %v901, 0.0
    %v1178 = vsel %vm1162, %v902, 0.0
    %v1179 = vsel %vm1163, %v903, 0.0
    %v1180 = vsel %vm1164, %v904, 0.0
    %v1181 = vadd.f32 %v1165, %v1166
    %v1182 = vadd.f32 %v1181, %v1167
    %v1183 = vadd.f32 %v1182, %v1168
    %v1184 = vadd.f32 %v1183, %v1169
    %v1185 = vadd.f32 %v1184, %v1170
    %v1186 = vadd.f32 %v1185, %v1171
    %v1187 = vadd.f32 %v1186, %v1172
    %v1188 = vadd.f32 %v1187, %v1173
    %v1189 = vadd.f32 %v1188, %v1174
    %v1190 = vadd.f32 %v1189, %v1175
    %v1191 = vadd.f32 %v1190, %v1176
    %v1192 = vadd.f32 %v1191, %v1177
    %v1193 = vadd.f32 %v1192, %v1178
    %v1194 = vadd.f32 %v1193, %v1179
    %v1195 = vadd.f32 %v1194, %v1180
    %v1196 = vrot.slane %v1195, 4
    %v1197 = vadd.f32 %v1195, %v1196
    %v1198 = vrot.slane %v1197, 2
    %v1199 = vadd.f32 %v1197, %v1198
    %v1200 = vrot.slane %v1199, 1
    %v1201 = vadd.f32 %v1199, %v1200
    %v1202 = vcvt.f32.s32.to.zero.pseudo %v1201
    %1203 = vst [vmem:[#allocation4] sm:$0x1] %v1202
    // Predicated region
    $region14: #{tpu_custom_call.1} parent=1 // pred_check
      _
    $region15: #{tpu_custom_call.1} parent=1 // pred_check_branch
      %1205 = sbr.rel (0) target = $region17
    $region16: #{tpu_custom_call.1} parent=1 // pred_region
      _
    $region17: #{tpu_custom_call.1} parent=1 // pred_fallthru
      _
    // Predicated region
    $region18: #{tpu_custom_call.1} parent=1 // pred_check
      _
    $region19: #{tpu_custom_call.1} parent=1 // pred_check_branch
      %1207 = sbr.rel (0) target = $region21
    $region20: #{tpu_custom_call.1} parent=1 // pred_region
      %s1209 = ssub.s32 16, 16
      %1210 = vsyncadd [#allocation3], %s1209
      %s1212 = sshll.u32 [#allocation2], 4
      %s1213 = int_to_ptr.vmem [resolvable:$true] %s1212
      %1215 = dma.vmem_to_hbm [thread:$0]  %s1213, 16, %s4, [#allocation3]
    $region21: #{tpu_custom_call.1} parent=1 // pred_fallthru
      _
    // Predicated region
    $region22: #{tpu_custom_call.1} parent=1 // pred_check
      _
    $region23: #{tpu_custom_call.1} parent=1 // pred_check_branch
      %1217 = sbr.rel (0) target = $region25
    $region24: #{tpu_custom_call.1} parent=1 // pred_region
      %s1219 = ssub.s32 16, 16
      %1220 = vsyncadd [#allocation5], %s1219
      %s1222 = sshll.u32 [#allocation4], 4
      %s1223 = int_to_ptr.vmem [resolvable:$true] %s1222
      %1225 = dma.vmem_to_hbm [thread:$0]  %s1223, 16, %s5, [#allocation5]
    $region25: #{tpu_custom_call.1} parent=1 // pred_fallthru
      _
    // Predicated region
    $region26: #{tpu_custom_call.1} parent=1 // pred_check
      _
    $region27: #{tpu_custom_call.1} parent=1 // pred_check_branch
      %1227 = sbr.rel (0) target = $region29
    $region28: #{tpu_custom_call.1} parent=1 // pred_region
      _
    $region29: #{tpu_custom_call.1} parent=1 // pred_fallthru
      _
    // Predicated region
    $region30: #{tpu_custom_call.1} parent=1 // pred_check
      _
    $region31: #{tpu_custom_call.1} parent=1 // pred_check_branch
      %1229 = sbr.rel (0) target = $region33
    $region32: #{tpu_custom_call.1} parent=1 // pred_region
      %1230 = dma.done [#allocation3], 16
    $region33: #{tpu_custom_call.1} parent=1 // pred_fallthru
      _
    // Predicated region
    $region34: #{tpu_custom_call.1} parent=1 // pred_check
      _
    $region35: #{tpu_custom_call.1} parent=1 // pred_check_branch
      %1232 = sbr.rel (0) target = $region37
    $region36: #{tpu_custom_call.1} parent=1 // pred_region
      %1233 = dma.done [#allocation5], 16
    $region37: #{tpu_custom_call.1} parent=1 // pred_fallthru
      _
    %1234 = vsyncpa [#allocation3], 1
    %1235 = vsyncpa [#allocation5], 1

</llo_original>
